<compile_context>
chip_gen: v7x
topology: tpu7x:2x2x1
jax: 0.10.0
libtpu: 0.0.40
codegen_flags: <defaults>
</compile_context>

<pallas_src>
import functools
import math

import jax
import jax.numpy as jnp
from jax import lax
from jax.experimental import pallas as pl
from jax.experimental.pallas import tpu as pltpu


def _conv3x3_lrelu_kernel(x_ref, w_ref, b_ref, o_ref, *, H, W):
    """Fused 3x3 conv (stride 1, pad 1) + LeakyReLU(0.01) for B folded batch images.

    Lane-dense layout, flattened spatial axis (H*W) minor:
      x_ref: (B*Cin,  H*W)        activations, image-major / channel-minor rows
      w_ref: (9, B*Cout, B*Cin)   per-tap block-diagonal weights (tap = kh*3 + kw)
      b_ref: (B*Cout, 1)          bias, tiled over the folded batch
      o_ref: (B*Cout, H*W)        output slab (minor dim multiple of 128 -> dense vst)
    """
    HW = H * W
    rows_in = x_ref.shape[0]     # B * Cin
    rows_out = o_ref.shape[0]    # B * Cout

    x = x_ref[...]               # (B*Cin, HW) f32

    # Border masks, hoisted out of the tap loop (review #3).  They depend only on the
    # lane position inside one image, so one set serves every folded image / channel.
    pos = lax.broadcasted_iota(jnp.int32, (rows_in, HW), 1)
    col = pos % W                          # cheap: W is a power of two here
    top_ok = pos >= W                      # dh = -1 needs hh >= 1
    bot_ok = pos < (H - 1) * W             # dh = +1 needs hh <= H-2
    left_ok = col >= 1                     # dw = -1 needs ww >= 1
    right_ok = col < (W - 1)               # dw = +1 needs ww <= W-2

    # Bias folded into the accumulator init (done once, outside the tap loop).
    acc = jnp.broadcast_to(b_ref[...], (rows_out, HW)).astype(jnp.float32)

    # 3x3 halo handled in-kernel: an XLU roll gives the (dh, dw)-shifted image and a
    # VPU select zeroes the out-of-image border (== padding=1).  Each tap's channel
    # contraction runs on the otherwise-idle MXU as one block-diagonal matmul that
    # covers every folded image at once (review #4).
    for kh in range(3):
        dh = kh - 1
        for kw in range(3):
            dw = kw - 1
            d = dh * W + dw
            shifted = x if d == 0 else pltpu.roll(x, (-d) % HW, 1)

            mask = None
            if dh < 0:
                mask = top_ok
            elif dh > 0:
                mask = bot_ok
            if dw < 0:
                mask = left_ok if mask is None else (mask & left_ok)
            elif dw > 0:
                mask = right_ok if mask is None else (mask & right_ok)
            if mask is not None:
                shifted = jnp.where(mask, shifted, 0.0)

            w_tap = w_ref[kh * 3 + kw]      # (B*Cout, B*Cin) direct slab read (review #5)
            acc = acc + jnp.dot(w_tap, shifted, preferred_element_type=jnp.float32)

    # LeakyReLU(negative_slope=0.01) epilogue in f32, then one dense lane-aligned store.
    y = jnp.where(acc >= 0, acc, 0.01 * acc)
    o_ref[...] = y.astype(o_ref.dtype)


@functools.partial(jax.jit, static_argnames=("batch_block", "min_grid_steps"))
def skip_connection_forward(x_nchw, weight_oihw, bias, *,
                            batch_block=None, min_grid_steps=1):
    """x_nchw: (N, Cin, H, W) f32; weight_oihw: (Cout, Cin, 3, 3); bias: (Cout,).
    Returns (N, Cout, H, W), matching torch Conv2d(3x3, s=1, p=1) + LeakyReLU(0.01).

    min_grid_steps: set to 2 on v7x so both TensorCores get a grid step; leave at 1 on
    v5e/v6e (grid is a serial loop there, so a single fat step is best).
    """
    N, Cin, H, W = x_nchw.shape
    Cout = weight_oihw.shape[0]
    HW = H * W

    # Batch folding (review #1): fill the 8 sublanes of the activation slab.
    if batch_block is None:
        batch_block = max(1, 8 // max(Cin, 1))
        batch_block = min(batch_block, max(1, N // max(min_grid_steps, 1)))
    B = max(1, math.gcd(batch_block, N))     # keep B a divisor of N (exact grid)
    G = N // B

    # Pure metadata reshape: NCHW is already lane-dense once spatial dims are flattened.
    x2d = x_nchw.reshape(N * Cin, HW)

    # One-time tiny parameter repack (review #5): tap-major weights, replicated
    # block-diagonally over the folded batch so one matmul per tap covers all B images.
    w_tap = jnp.transpose(weight_oihw, (2, 3, 0, 1)).reshape(9, Cout, Cin)
    eye_b = jnp.eye(B, dtype=w_tap.dtype)
    w_bd = jnp.einsum("toc,ij->tiojc", w_tap, eye_b).reshape(9, B * Cout, B * Cin)
    b_bd = jnp.tile(bias, (B,)).reshape(B * Cout, 1)

    kernel = functools.partial(_conv3x3_lrelu_kernel, H=H, W=W)

    out2d = pl.pallas_call(
        kernel,
        out_shape=jax.ShapeDtypeStruct((N * Cout, HW), x_nchw.dtype),
        grid_spec=pltpu.PrefetchScalarGridSpec(
            num_scalar_prefetch=0,
            grid=(G,),
            in_specs=[
                pl.BlockSpec((B * Cin, HW), lambda g: (g, 0)),
                # Constant-index param blocks: DMA'd once, re-copy skipped on later steps.
                pl.BlockSpec((9, B * Cout, B * Cin), lambda g: (0, 0, 0)),
                pl.BlockSpec((B * Cout, 1), lambda g: (0, 0)),
            ],
            out_specs=pl.BlockSpec((B * Cout, HW), lambda g: (g, 0)),
        ),
        compiler_params=pltpu.CompilerParams(
            dimension_semantics=("parallel",)),
    )(x2d, w_bd, b_bd)

    # Metadata-only reshape back to the PyTorch NCHW output convention.
    return out2d.reshape(N, Cout, H, W)


if __name__ == "__main__":
    # Small shapes consistent with the module: batch=2, in=4, out=8, 16x16 spatial.
    N, Cin, Cout, H, W = 2, 4, 8, 16, 16

    key = jax.random.PRNGKey(0)
    kx, kw_, kb = jax.random.split(key, 3)

    x = jax.random.normal(kx, (N, Cin, H, W), dtype=jnp.float32)

    # Deterministic Conv2d(in=4, out=8, k=3) parameters (PyTorch OIHW layout).
    fan_in = Cin * 3 * 3
    bound = 1.0 / (fan_in ** 0.5)
    weight_oihw = jax.random.uniform(kw_, (Cout, Cin, 3, 3),
                                     minval=-bound, maxval=bound,
                                     dtype=jnp.float32)
    bias = jax.random.uniform(kb, (Cout,), minval=-bound, maxval=bound,
                              dtype=jnp.float32)

    out = skip_connection_forward(x, weight_oihw, bias)
    out = jax.block_until_ready(out)

    # Sanity check against a high-precision XLA conv reference.  Tolerance leaves room
    # for MXU f32 multi-pass rounding; real structural bugs are orders of magnitude off.
    ref = lax.conv_general_dilated(
        x, weight_oihw, window_strides=(1, 1), padding=((1, 1), (1, 1)),
        dimension_numbers=("NCHW", "OIHW", "NCHW"),
        precision=lax.Precision.HIGHEST,
    ) + bias.reshape(1, Cout, 1, 1)
    ref = jnp.where(ref >= 0, ref, 0.01 * ref)

    assert out.shape == (N, Cout, H, W)
    assert jnp.allclose(out, ref, atol=5e-3, rtol=5e-3)

    print("KERNEL_OK")
</pallas_src>

<mosaic_0001>
module attributes {stable_mosaic.version = 11 : i64} {
  func.func @_conv3x3_lrelu_kernel(%arg0: i32, %arg1: memref<8x256xf32, #tpu.memory_space<vmem>>, %arg2: memref<9x16x8xf32, #tpu.memory_space<vmem>>, %arg3: memref<16x1xf32, #tpu.memory_space<vmem>>, %arg4: memref<16x256xf32, #tpu.memory_space<vmem>>) attributes {dimension_semantics = [#tpu.dimension_semantics<parallel>], iteration_bounds = array<i64: 1>, scalar_prefetch = 0 : i64, scratch_operands = 0 : i64, tpu.core_type = #tpu.core_type<tc>, window_params = [{transform_indices = @transform_0, window_bounds = array<i64: 8, 256>}, {pipeline_mode = #tpu.pipeline_mode<synchronous>, transform_indices = @transform_1, window_bounds = array<i64: 9, 16, 8>}, {pipeline_mode = #tpu.pipeline_mode<synchronous>, transform_indices = @transform_2, window_bounds = array<i64: 16, 1>}, {transform_indices = @transform_3, window_bounds = array<i64: 16, 256>}]} {
    %c0 = arith.constant 0 : index
    %c0_0 = arith.constant 0 : index
    %0 = vector.load %arg1[%c0, %c0_0] : memref<8x256xf32, #tpu.memory_space<vmem>>, vector<8x256xf32>
    %1 = tpu.iota {dimensions = array<i32: 1>} : vector<8x256xi32>
    %c16_i32 = arith.constant 16 : i32
    %c0_i32 = arith.constant 0 : i32
    %2 = arith.cmpi eq, %c16_i32, %c0_i32 : i32
    %c1_i32 = arith.constant 1 : i32
    %3 = arith.select %2, %c1_i32, %c16_i32 : i32
    %4 = vector.broadcast %3 : i32 to vector<8x256xi32>
    %5 = arith.remsi %1, %4 : vector<8x256xi32>
    %c0_i32_1 = arith.constant 0 : i32
    %6 = vector.broadcast %c0_i32_1 : i32 to vector<8x256xi32>
    %7 = arith.cmpi ne, %5, %6 : vector<8x256xi32>
    %c0_i32_2 = arith.constant 0 : i32
    %8 = vector.broadcast %c0_i32_2 : i32 to vector<8x256xi32>
    %9 = arith.cmpi slt, %5, %8 : vector<8x256xi32>
    %c0_i32_3 = arith.constant 0 : i32
    %10 = arith.cmpi slt, %3, %c0_i32_3 : i32
    %11 = vector.broadcast %10 : i1 to vector<8x256xi1>
    %12 = vector.broadcast %11 : vector<8x256xi1> to vector<8x256xi1>
    %13 = arith.xori %9, %12 : vector<8x256xi1>
    %14 = arith.andi %13, %7 : vector<8x256xi1>
    %15 = vector.broadcast %3 : i32 to vector<8x256xi32>
    %16 = arith.addi %5, %15 : vector<8x256xi32>
    %17 = arith.select %14, %16, %5 : vector<8x256xi1>, vector<8x256xi32>
    %c16_i32_4 = arith.constant 16 : i32
    %18 = vector.broadcast %c16_i32_4 : i32 to vector<8x256xi32>
    %19 = arith.cmpi sge, %1, %18 : vector<8x256xi32>
    %c240_i32 = arith.constant 240 : i32
    %20 = vector.broadcast %c240_i32 : i32 to vector<8x256xi32>
    %21 = arith.cmpi slt, %1, %20 : vector<8x256xi32>
    %c1_i32_5 = arith.constant 1 : i32
    %22 = vector.broadcast %c1_i32_5 : i32 to vector<8x256xi32>
    %23 = arith.cmpi sge, %17, %22 : vector<8x256xi32>
    %c15_i32 = arith.constant 15 : i32
    %24 = vector.broadcast %c15_i32 : i32 to vector<8x256xi32>
    %25 = arith.cmpi slt, %17, %24 : vector<8x256xi32>
    %c0_6 = arith.constant 0 : index
    %c0_7 = arith.constant 0 : index
    %26 = vector.load %arg3[%c0_6, %c0_7] : memref<16x1xf32, #tpu.memory_space<vmem>>, vector<16x1xf32>
    %27 = vector.shape_cast %26 : vector<16x1xf32> to vector<16x1xf32>
    %28 = vector.broadcast %27 : vector<16x1xf32> to vector<16x256xf32>
    %c17_i32 = arith.constant 17 : i32
    %29 = tpu.dynamic_rotate %0 by %c17_i32 dim 1 : vector<8x256xf32>, i32 -> vector<8x256xf32>
    %30 = arith.andi %19, %23 : vector<8x256xi1>
    %cst = arith.constant 0.000000e+00 : f32
    %31 = vector.broadcast %cst : f32 to vector<8x256xf32>
    %32 = arith.select %30, %29, %31 : vector<8x256xi1>, vector<8x256xf32>
    %c0_8 = arith.constant 0 : index
    %c0_9 = arith.constant 0 : index
    %c0_10 = arith.constant 0 : index
    %33 = vector.load %arg2[%c0_8, %c0_9, %c0_10] : memref<9x16x8xf32, #tpu.memory_space<vmem>>, vector<1x16x8xf32>
    %34 = vector.shape_cast %33 : vector<1x16x8xf32> to vector<16x8xf32>
    %cst_11 = arith.constant dense<0.000000e+00> : vector<16x256xf32>
    %35 = tpu.matmul %34, %32, %cst_11 {dimension_numbers = #tpu.dot_dimension_numbers<[1], [0], [0], [1], [0, 0, 1, 1], [], []>} : vector<16x8xf32>, vector<8x256xf32>, vector<16x256xf32> -> vector<16x256xf32>
    %36 = arith.addf %28, %35 : vector<16x256xf32>
    %c16_i32_12 = arith.constant 16 : i32
    %37 = tpu.dynamic_rotate %0 by %c16_i32_12 dim 1 : vector<8x256xf32>, i32 -> vector<8x256xf32>
    %cst_13 = arith.constant 0.000000e+00 : f32
    %38 = vector.broadcast %cst_13 : f32 to vector<8x256xf32>
    %39 = arith.select %19, %37, %38 : vector<8x256xi1>, vector<8x256xf32>
    %c1 = arith.constant 1 : index
    %c0_14 = arith.constant 0 : index
    %c0_15 = arith.constant 0 : index
    %40 = vector.load %arg2[%c1, %c0_14, %c0_15] : memref<9x16x8xf32, #tpu.memory_space<vmem>>, vector<1x16x8xf32>
    %41 = vector.shape_cast %40 : vector<1x16x8xf32> to vector<16x8xf32>
    %cst_16 = arith.constant dense<0.000000e+00> : vector<16x256xf32>
    %42 = tpu.matmul %41, %39, %cst_16 {dimension_numbers = #tpu.dot_dimension_numbers<[1], [0], [0], [1], [0, 0, 1, 1], [], []>} : vector<16x8xf32>, vector<8x256xf32>, vector<16x256xf32> -> vector<16x256xf32>
    %43 = arith.addf %36, %42 : vector<16x256xf32>
    %c15_i32_17 = arith.constant 15 : i32
    %44 = tpu.dynamic_rotate %0 by %c15_i32_17 dim 1 : vector<8x256xf32>, i32 -> vector<8x256xf32>
    %45 = arith.andi %19, %25 : vector<8x256xi1>
    %cst_18 = arith.constant 0.000000e+00 : f32
    %46 = vector.broadcast %cst_18 : f32 to vector<8x256xf32>
    %47 = arith.select %45, %44, %46 : vector<8x256xi1>, vector<8x256xf32>
    %c2 = arith.constant 2 : index
    %c0_19 = arith.constant 0 : index
    %c0_20 = arith.constant 0 : index
    %48 = vector.load %arg2[%c2, %c0_19, %c0_20] : memref<9x16x8xf32, #tpu.memory_space<vmem>>, vector<1x16x8xf32>
    %49 = vector.shape_cast %48 : vector<1x16x8xf32> to vector<16x8xf32>
    %cst_21 = arith.constant dense<0.000000e+00> : vector<16x256xf32>
    %50 = tpu.matmul %49, %47, %cst_21 {dimension_numbers = #tpu.dot_dimension_numbers<[1], [0], [0], [1], [0, 0, 1, 1], [], []>} : vector<16x8xf32>, vector<8x256xf32>, vector<16x256xf32> -> vector<16x256xf32>
    %51 = arith.addf %43, %50 : vector<16x256xf32>
    %c1_i32_22 = arith.constant 1 : i32
    %52 = tpu.dynamic_rotate %0 by %c1_i32_22 dim 1 : vector<8x256xf32>, i32 -> vector<8x256xf32>
    %cst_23 = arith.constant 0.000000e+00 : f32
    %53 = vector.broadcast %cst_23 : f32 to vector<8x256xf32>
    %54 = arith.select %23, %52, %53 : vector<8x256xi1>, vector<8x256xf32>
    %c3 = arith.constant 3 : index
    %c0_24 = arith.constant 0 : index
    %c0_25 = arith.constant 0 : index
    %55 = vector.load %arg2[%c3, %c0_24, %c0_25] : memref<9x16x8xf32, #tpu.memory_space<vmem>>, vector<1x16x8xf32>
    %56 = vector.shape_cast %55 : vector<1x16x8xf32> to vector<16x8xf32>
    %cst_26 = arith.constant dense<0.000000e+00> : vector<16x256xf32>
    %57 = tpu.matmul %56, %54, %cst_26 {dimension_numbers = #tpu.dot_dimension_numbers<[1], [0], [0], [1], [0, 0, 1, 1], [], []>} : vector<16x8xf32>, vector<8x256xf32>, vector<16x256xf32> -> vector<16x256xf32>
    %58 = arith.addf %51, %57 : vector<16x256xf32>
    %c4 = arith.constant 4 : index
    %c0_27 = arith.constant 0 : index
    %c0_28 = arith.constant 0 : index
    %59 = vector.load %arg2[%c4, %c0_27, %c0_28] : memref<9x16x8xf32, #tpu.memory_space<vmem>>, vector<1x16x8xf32>
    %60 = vector.shape_cast %59 : vector<1x16x8xf32> to vector<16x8xf32>
    %cst_29 = arith.constant dense<0.000000e+00> : vector<16x256xf32>
    %61 = tpu.matmul %60, %0, %cst_29 {dimension_numbers = #tpu.dot_dimension_numbers<[1], [0], [0], [1], [0, 0, 1, 1], [], []>} : vector<16x8xf32>, vector<8x256xf32>, vector<16x256xf32> -> vector<16x256xf32>
    %62 = arith.addf %58, %61 : vector<16x256xf32>
    %c255_i32 = arith.constant 255 : i32
    %63 = tpu.dynamic_rotate %0 by %c255_i32 dim 1 : vector<8x256xf32>, i32 -> vector<8x256xf32>
    %cst_30 = arith.constant 0.000000e+00 : f32
    %64 = vector.broadcast %cst_30 : f32 to vector<8x256xf32>
    %65 = arith.select %25, %63, %64 : vector<8x256xi1>, vector<8x256xf32>
    %c5 = arith.constant 5 : index
    %c0_31 = arith.constant 0 : index
    %c0_32 = arith.constant 0 : index
    %66 = vector.load %arg2[%c5, %c0_31, %c0_32] : memref<9x16x8xf32, #tpu.memory_space<vmem>>, vector<1x16x8xf32>
    %67 = vector.shape_cast %66 : vector<1x16x8xf32> to vector<16x8xf32>
    %cst_33 = arith.constant dense<0.000000e+00> : vector<16x256xf32>
    %68 = tpu.matmul %67, %65, %cst_33 {dimension_numbers = #tpu.dot_dimension_numbers<[1], [0], [0], [1], [0, 0, 1, 1], [], []>} : vector<16x8xf32>, vector<8x256xf32>, vector<16x256xf32> -> vector<16x256xf32>
    %69 = arith.addf %62, %68 : vector<16x256xf32>
    %c241_i32 = arith.constant 241 : i32
    %70 = tpu.dynamic_rotate %0 by %c241_i32 dim 1 : vector<8x256xf32>, i32 -> vector<8x256xf32>
    %71 = arith.andi %21, %23 : vector<8x256xi1>
    %cst_34 = arith.constant 0.000000e+00 : f32
    %72 = vector.broadcast %cst_34 : f32 to vector<8x256xf32>
    %73 = arith.select %71, %70, %72 : vector<8x256xi1>, vector<8x256xf32>
    %c6 = arith.constant 6 : index
    %c0_35 = arith.constant 0 : index
    %c0_36 = arith.constant 0 : index
    %74 = vector.load %arg2[%c6, %c0_35, %c0_36] : memref<9x16x8xf32, #tpu.memory_space<vmem>>, vector<1x16x8xf32>
    %75 = vector.shape_cast %74 : vector<1x16x8xf32> to vector<16x8xf32>
    %cst_37 = arith.constant dense<0.000000e+00> : vector<16x256xf32>
    %76 = tpu.matmul %75, %73, %cst_37 {dimension_numbers = #tpu.dot_dimension_numbers<[1], [0], [0], [1], [0, 0, 1, 1], [], []>} : vector<16x8xf32>, vector<8x256xf32>, vector<16x256xf32> -> vector<16x256xf32>
    %77 = arith.addf %69, %76 : vector<16x256xf32>
    %c240_i32_38 = arith.constant 240 : i32
    %78 = tpu.dynamic_rotate %0 by %c240_i32_38 dim 1 : vector<8x256xf32>, i32 -> vector<8x256xf32>
    %cst_39 = arith.constant 0.000000e+00 : f32
    %79 = vector.broadcast %cst_39 : f32 to vector<8x256xf32>
    %80 = arith.select %21, %78, %79 : vector<8x256xi1>, vector<8x256xf32>
    %c7 = arith.constant 7 : index
    %c0_40 = arith.constant 0 : index
    %c0_41 = arith.constant 0 : index
    %81 = vector.load %arg2[%c7, %c0_40, %c0_41] : memref<9x16x8xf32, #tpu.memory_space<vmem>>, vector<1x16x8xf32>
    %82 = vector.shape_cast %81 : vector<1x16x8xf32> to vector<16x8xf32>
    %cst_42 = arith.constant dense<0.000000e+00> : vector<16x256xf32>
    %83 = tpu.matmul %82, %80, %cst_42 {dimension_numbers = #tpu.dot_dimension_numbers<[1], [0], [0], [1], [0, 0, 1, 1], [], []>} : vector<16x8xf32>, vector<8x256xf32>, vector<16x256xf32> -> vector<16x256xf32>
    %84 = arith.addf %77, %83 : vector<16x256xf32>
    %c239_i32 = arith.constant 239 : i32
    %85 = tpu.dynamic_rotate %0 by %c239_i32 dim 1 : vector<8x256xf32>, i32 -> vector<8x256xf32>
    %86 = arith.andi %21, %25 : vector<8x256xi1>
    %cst_43 = arith.constant 0.000000e+00 : f32
    %87 = vector.broadcast %cst_43 : f32 to vector<8x256xf32>
    %88 = arith.select %86, %85, %87 : vector<8x256xi1>, vector<8x256xf32>
    %c8 = arith.constant 8 : index
    %c0_44 = arith.constant 0 : index
    %c0_45 = arith.constant 0 : index
    %89 = vector.load %arg2[%c8, %c0_44, %c0_45] : memref<9x16x8xf32, #tpu.memory_space<vmem>>, vector<1x16x8xf32>
    %90 = vector.shape_cast %89 : vector<1x16x8xf32> to vector<16x8xf32>
    %cst_46 = arith.constant dense<0.000000e+00> : vector<16x256xf32>
    %91 = tpu.matmul %90, %88, %cst_46 {dimension_numbers = #tpu.dot_dimension_numbers<[1], [0], [0], [1], [0, 0, 1, 1], [], []>} : vector<16x8xf32>, vector<8x256xf32>, vector<16x256xf32> -> vector<16x256xf32>
    %92 = arith.addf %84, %91 : vector<16x256xf32>
    %cst_47 = arith.constant 0.000000e+00 : f32
    %93 = vector.broadcast %cst_47 : f32 to vector<16x256xf32>
    %94 = arith.cmpf oge, %92, %93 : vector<16x256xf32>
    %cst_48 = arith.constant 0.00999999977 : f32
    %95 = vector.broadcast %cst_48 : f32 to vector<16x256xf32>
    %96 = arith.mulf %95, %92 : vector<16x256xf32>
    %97 = arith.select %94, %92, %96 : vector<16x256xi1>, vector<16x256xf32>
    %c0_49 = arith.constant 0 : index
    %c0_50 = arith.constant 0 : index
    %98 = vector.load %arg4[%c0_49, %c0_50] : memref<16x256xf32, #tpu.memory_space<vmem>>, vector<16x256xf32>
    tpu.vector_store %arg4[%c0_49, %c0_50], %97 {strides = array<i32>} : memref<16x256xf32, #tpu.memory_space<vmem>>, vector<16x256xf32>,
    return
  }
  func.func @transform_0(%arg0: i32) -> (i32, i32) {
    %c0_i32 = arith.constant 0 : i32
    %c0_i32_0 = arith.constant 0 : i32
    return %arg0, %c0_i32 : i32, i32
  }
  func.func @transform_1(%arg0: i32) -> (i32, i32, i32) {
    %c0_i32 = arith.constant 0 : i32
    %c0_i32_0 = arith.constant 0 : i32
    %c0_i32_1 = arith.constant 0 : i32
    %c0_i32_2 = arith.constant 0 : i32
    return %c0_i32, %c0_i32_0, %c0_i32_1 : i32, i32, i32
  }
  func.func @transform_2(%arg0: i32) -> (i32, i32) {
    %c0_i32 = arith.constant 0 : i32
    %c0_i32_0 = arith.constant 0 : i32
    %c0_i32_1 = arith.constant 0 : i32
    return %c0_i32, %c0_i32_0 : i32, i32
  }
  func.func @transform_3(%arg0: i32) -> (i32, i32) {
    %c0_i32 = arith.constant 0 : i32
    %c0_i32_0 = arith.constant 0 : i32
    return %arg0, %c0_i32 : i32, i32
  }
}

</mosaic_0001>

<llo_original>
// kernel: tile.8
$region0: #{tile.8}
  #allocation0 [shape = 's32[1]{0}', space=sflag, size = 0x4, scoped, tag = 'scoped memory for tile.8']
  %s0 = inlined_call_operand.vmem [shape: f32[8], index: 0, kind: input, shape index: {}]
  %s1 = inlined_call_operand.vmem [shape: f32[2,8], index: 1, kind: output, shape index: {}]
  // Predicated region
  $region2: #{tile.8} parent=0 // pred_check
    _
  $region3: #{tile.8} parent=0 // pred_check_branch
    %3 = sbr.rel (0) target = $region5
  $region4: #{tile.8} parent=0 // pred_region
    _
  $region5: #{tile.8} parent=0 // pred_fallthru
    _
  %v4 = vld [vmem:[%s0] ss:$0 sm:$0xff]
  %5 = vst [vmem:[%s1] sm:$0x3] %v4

// kernel: tile.0
$region0: #{tile.0}
  %s0 = inlined_call_operand.vmem [shape: f32[2,8], index: 0, kind: input, shape index: {}]
  %s1 = inlined_call_operand.vmem [shape: f32[16,1], index: 1, kind: output, shape index: {}]
  $region1: #{tile.0} parent=0
    #allocation0 [shape = 'u8[4096]{0}', space=vmem, size = 0x1000, scoped, tag = 'scoped mem for input reshape']
    %s3 = sshllo.u32 0, 2
    %v4 = vld [vmem:[%s0] sm:%s3]
    %5 = vst [vmem:[#allocation0] sm:%s3] %v4
    %v6 = vld [vmem:[#allocation0] sm:$0x3]
    %vm7 = vcmask 7168
    %8 = vst.msk [vmem:[%s1] ss:$8 sm:$0x3] %vm7, %v6
    %v9 = vld [vmem:[#allocation0] sm:$0x3]
    %10 = vrot.lane.b32.xlu0 %v9, 127
    %v11 = vpop.permute.xlu0 %10
    %vm12 = vcmask 7168
    %s13 = scalar_lea.vmem %s1, 1
    %14 = vst.msk [vmem:[%s13] ss:$8 sm:$0x3] %vm12, %v11
    %v15 = vld [vmem:[#allocation0] sm:$0x3]
    %16 = vrot.lane.b32.xlu0 %v15, 126
    %v17 = vpop.permute.xlu0 %16
    %vm18 = vcmask 7168
    %s19 = scalar_lea.vmem %s1, 2
    %20 = vst.msk [vmem:[%s19] ss:$8 sm:$0x3] %vm18, %v17
    %v21 = vld [vmem:[#allocation0] sm:$0x3]
    %22 = vrot.lane.b32.xlu0 %v21, 125
    %v23 = vpop.permute.xlu0 %22
    %vm24 = vcmask 7168
    %s25 = scalar_lea.vmem %s1, 3
    %26 = vst.msk [vmem:[%s25] ss:$8 sm:$0x3] %vm24, %v23
    %v27 = vld [vmem:[#allocation0] sm:$0x3]
    %28 = vrot.lane.b32.xlu0 %v27, 124
    %v29 = vpop.permute.xlu0 %28
    %vm30 = vcmask 7168
    %s31 = scalar_lea.vmem %s1, 4
    %32 = vst.msk [vmem:[%s31] ss:$8 sm:$0x3] %vm30, %v29
    %v33 = vld [vmem:[#allocation0] sm:$0x3]
    %34 = vrot.lane.b32.xlu0 %v33, 123
    %v35 = vpop.permute.xlu0 %34
    %vm36 = vcmask 7168
    %s37 = scalar_lea.vmem %s1, 5
    %38 = vst.msk [vmem:[%s37] ss:$8 sm:$0x3] %vm36, %v35
    %v39 = vld [vmem:[#allocation0] sm:$0x3]
    %40 = vrot.lane.b32.xlu0 %v39, 122
    %v41 = vpop.permute.xlu0 %40
    %vm42 = vcmask 7168
    %s43 = scalar_lea.vmem %s1, 6
    %44 = vst.msk [vmem:[%s43] ss:$8 sm:$0x3] %vm42, %v41
    %v45 = vld [vmem:[#allocation0] sm:$0x3]
    %46 = vrot.lane.b32.xlu0 %v45, 121
    %v47 = vpop.permute.xlu0 %46
    %vm48 = vcmask 7168
    %s49 = scalar_lea.vmem %s1, 7
    %50 = vst.msk [vmem:[%s49] ss:$8 sm:$0x3] %vm48, %v47

// kernel: skip_connection_forward.1
$region0: #{skip_connection_forward.1}
  #allocation0 [shape = 'u32[]', space=smem, size = 0x4, offset = 0x4, fixed_abs, tag = 'smem constant byte address 0x4 - core index']
  #allocation1 [shape = 'u32[144,128]{1,0:T(1,128)}', space=vmem, size = 0x12000, scoped, tag = 'internal scratch']
  %s0 = inlined_call_operand.vmem [shape: f32[8,256], index: 0, kind: input, shape index: {}]
  %s1 = inlined_call_operand.vmem [shape: f32[9,16,8], index: 1, kind: input, shape index: {}]
  %s2 = inlined_call_operand.vmem [shape: f32[16,1], index: 2, kind: input, shape index: {}]
  %s3 = inlined_call_operand.vmem [shape: f32[16,256], index: 3, kind: output, shape index: {}]
  %s4 = sld [smem:[#allocation0]]
  $region22: #{skip_connection_forward.1} parent=0
    _
  %s6 = ssub.s32 1, %s4
  %s7 = scalar_select 0, %s6, %s4
  // Predicated region
  $region2: #{skip_connection_forward.1} parent=0 // pred_check
    _
  $region3: #{skip_connection_forward.1} parent=0 // pred_check_branch
    %9 = sbr.rel (0) target = $region5
  $region4: #{skip_connection_forward.1} parent=0 // pred_region
    _
  $region5: #{skip_connection_forward.1} parent=0 // pred_fallthru
    _
  // Predicated region
  $region6: #{skip_connection_forward.1} parent=0 // pred_check
    _
  $region7: #{skip_connection_forward.1} parent=0 // pred_check_branch
    %11 = sbr.rel (0) target = $region9
  $region8: #{skip_connection_forward.1} parent=0 // pred_region
    _
  $region9: #{skip_connection_forward.1} parent=0 // pred_fallthru
    _
  // Predicated region
  $region10: #{skip_connection_forward.1} parent=0 // pred_check
    _
  $region11: #{skip_connection_forward.1} parent=0 // pred_check_branch
    %13 = sbr.rel (0) target = $region13
  $region12: #{skip_connection_forward.1} parent=0 // pred_region
    _
  $region13: #{skip_connection_forward.1} parent=0 // pred_fallthru
    _
  %v14 = vld [vmem:[%s0] sm:$0xff]
  %v15 = vld [vmem:[%s0 + $0x8] sm:$0xff]
  %v16 = vlaneseq
  %v17 = vand.u32 %v16, 127
  %v18 = vadd.s32 %v17, 128
  %vm19 = vcmp.lt.s32.totalorder %v17, 0
  %v20 = vsub.s32 0, %v17
  %v21 = vsel %vm19, %v20, %v17
  %v22 = vshrl.u32 %v21, 4
  %v23 = vand.u32 %v21, 15
  %v24 = vsub.s32 0, %v23
  %v25 = vsel %vm19, %v24, %v23
  %vm26 = vcmp.lt.s32.totalorder %v18, 0
  %v27 = vsub.s32 0, %v18
  %v28 = vsel %vm26, %v27, %v18
  %v29 = vshrl.u32 %v28, 4
  %v30 = vand.u32 %v28, 15
  %v31 = vsub.s32 0, %v30
  %v32 = vsel %vm26, %v31, %v30
  %vm33 = vcmp.ne.s32.totalorder %v25, 0
  %vm34 = vcmp.ne.s32.totalorder %v32, 0
  %vm35 = vcmp.lt.s32.totalorder %v25, 0
  %vm36 = vcmp.lt.s32.totalorder %v32, 0
  %vm37 = vmand %vm35, %vm33
  %vm38 = vmand %vm36, %vm34
  %v39 = vadd.s32 %v25, 16
  %v40 = vadd.s32 %v32, 16
  %v41 = vsel %vm37, %v39, %v25
  %v42 = vsel %vm38, %v40, %v32
  %vm43 = vcmp.ge.s32.totalorder %v17, 16
  %vm44 = vcmp.ge.s32.totalorder %v18, 16
  %vm45 = vcmp.lt.s32.totalorder %v17, 240
  %vm46 = vcmp.lt.s32.totalorder %v18, 240
  %vm47 = vcmp.ge.s32.totalorder %v41, 1
  %vm48 = vcmp.ge.s32.totalorder %v42, 1
  %vm49 = vcmp.lt.s32.totalorder %v41, 15
  %vm50 = vcmp.lt.s32.totalorder %v42, 15
  %v51 = vld [vmem:[%s2] sm:$0xff]
  %v52 = vld [vmem:[%s2 + $0x8] sm:$0xff]
  %54 = vset.pattern.permute.xlu0 0
  %55 = vperm.xlu0 %54, %v51
  %v56 = vpop.permute.xlu0 %55
  %59 = vset.pattern.permute.xlu0 0
  %60 = vperm.xlu0 %59, %v52
  %v61 = vpop.permute.xlu0 %60
  %63 = vrot.lane.b32.xlu0 %v14, 17
  %v64 = vpop.permute.xlu0 %63
  %65 = vrot.lane.b32.xlu0 %v15, 17
  %v66 = vpop.permute.xlu0 %65
  %vm67 = vcmp.lt.s32.totalorder %v17, 17
  %v68 = vsel %vm67, %v64, %v66
  %v69 = vsel %vm67, %v66, %v64
  %vm70 = vmand %vm43, %vm47
  %vm71 = vmand %vm44, %vm48
  %v72 = vsel %vm70, %v69, 0.0
  %v73 = vsel %vm71, %v68, 0.0
  %v74 = vld [vmem:[%s1] sm:$0xff]
  %v75 = vld [vmem:[%s1 + $0x8] sm:$0xff]
  %vm76 = vcmask 64512
  %v78 = vsel %vm76, %v74, 0
  %v81 = vsel %vm76, %v75, 0
  %83 = vmatprep.subr.mxu0 %v73
  %84 = vmatpush1.msra.mxu0 %v72
  %85 = vmatprep.subr.mxu0 0.0
  %86 = vmatpush1.msra.mxu0 0.0
  %87 = vmatprep.subr.mxu0 0.0
  %88 = vmatpush1.msra.mxu0 0.0
  %89 = vmatprep.subr.mxu0 0.0
  %90 = vmatpush1.msra.mxu0 0.0
  %91 = vmatprep.subr.mxu0 0.0
  %92 = vmatpush1.msra.mxu0 0.0
  %93 = vmatprep.subr.mxu0 0.0
  %94 = vmatpush1.msra.mxu0 0.0
  %95 = vmatprep.subr.mxu0 0.0
  %96 = vmatpush1.msra.mxu0 0.0
  %97 = vmatprep.subr.mxu0 0.0
  %98 = vmatpush1.msra.mxu0 0.0
  %99 = vmatprep.subr.mxu0 0.0
  %100 = vmatpush1.msra.mxu0 0.0
  %101 = vmatprep.subr.mxu0 0.0
  %102 = vmatpush1.msra.mxu0 0.0
  %103 = vmatprep.subr.mxu0 0.0
  %104 = vmatpush1.msra.mxu0 0.0
  %105 = vmatprep.subr.mxu0 0.0
  %106 = vmatpush1.msra.mxu0 0.0
  %107 = vmatprep.subr.mxu0 0.0
  %108 = vmatpush1.msra.mxu0 0.0
  %109 = vmatprep.subr.mxu0 0.0
  %110 = vmatpush1.msra.mxu0 0.0
  %111 = vmatprep.subr.mxu0 0.0
  %112 = vmatpush1.msra.mxu0 0.0
  %113 = vmatprep.subr.mxu0 0.0
  %114 = vmatpush1.msra.mxu0 0.0
  %115 = vmatprep.subr.mxu0 0.0
  %116 = vmatpush1.msra.mxu0 0.0
  %117 = vmatprep.subr.mxu0 0.0
  %118 = vmatpush1.msra.mxu0 0.0
  %119 = vmatprep.subr.mxu0 0.0
  %120 = vmatpush1.msra.mxu0 0.0
  %121 = vmatprep.subr.mxu0 0.0
  %122 = vmatpush1.msra.mxu0 0.0
  %123 = vmatprep.subr.mxu0 0.0
  %124 = vmatpush1.msra.mxu0 0.0
  %125 = vmatprep.subr.mxu0 0.0
  %126 = vmatpush1.msra.mxu0 0.0
  %127 = vmatprep.subr.mxu0 0.0
  %128 = vmatpush1.msra.mxu0 0.0
  %129 = vmatprep.subr.mxu0 0.0
  %130 = vmatpush1.msra.mxu0 0.0
  %131 = vmatprep.subr.mxu0 0.0
  %132 = vmatpush1.msra.mxu0 0.0
  %133 = vmatprep.subr.mxu0 0.0
  %134 = vmatpush1.msra.mxu0 0.0
  %135 = vmatprep.subr.mxu0 0.0
  %136 = vmatpush1.msra.mxu0 0.0
  %137 = vmatprep.subr.mxu0 0.0
  %138 = vmatpush1.msra.mxu0 0.0
  %139 = vmatprep.subr.mxu0 0.0
  %140 = vmatpush1.msra.mxu0 0.0
  %141 = vmatprep.subr.mxu0 0.0
  %142 = vmatpush1.msra.mxu0 0.0
  %143 = vmatprep.subr.mxu0 0.0
  %144 = vmatpush1.msra.mxu0 0.0
  %145 = vmatprep.subr.mxu0 0.0
  %146 = vmatpush1.msra.mxu0 0.0
  %147 = vmatprep.mubr.f32.mxu0 0.0
  %148 = vmatmul.mubr.f32.gmra.mrb[0].mxu0 %v78
  %v149 = vpop.f32.mrb[0].mxu0
  %v150 = vadd.f32 0.0, %v149
  %v151 = vpop.f32.mrb[0].mxu0
  %v152 = vadd.f32 0.0, %v151
  %153 = vmatprep.mubr.f32.mxu0 0.0
  %154 = vmatmul.mubr.f32.gmra.mrb[0].mxu0 %v81
  %v155 = vpop.f32.mrb[0].mxu0
  %v156 = vadd.f32 0.0, %v155
  %v157 = vpop.f32.mrb[0].mxu0
  %v158 = vadd.f32 0.0, %v157
  %159 = vdwg.mxu0
  %v160 = vadd.f32 %v56, %v150
  %v161 = vadd.f32 %v56, %v152
  %v162 = vadd.f32 %v61, %v156
  %v163 = vadd.f32 %v61, %v158
  %164 = vrot.lane.b32.xlu0 %v14, 16
  %v165 = vpop.permute.xlu0 %164
  %166 = vrot.lane.b32.xlu0 %v15, 16
  %v167 = vpop.permute.xlu0 %166
  %vm168 = vcmp.lt.s32.totalorder %v17, 16
  %v169 = vsel %vm168, %v165, %v167
  %v170 = vsel %vm168, %v167, %v165
  %v171 = vsel %vm43, %v170, 0.0
  %v172 = vsel %vm44, %v169, 0.0
  %s173 = scalar_lea.vmem %s1, 16
  %v174 = vld [vmem:[%s173] sm:$0xff]
  %v175 = vld [vmem:[%s173 + $0x8] sm:$0xff]
  %v177 = vsel %vm76, %v174, 0
  %v180 = vsel %vm76, %v175, 0
  %182 = vmatprep.subr.mxu0 %v172
  %183 = vmatpush1.msra.mxu0 %v171
  %184 = vmatprep.subr.mxu0 0.0
  %185 = vmatpush1.msra.mxu0 0.0
  %186 = vmatprep.subr.mxu0 0.0
  %187 = vmatpush1.msra.mxu0 0.0
  %188 = vmatprep.subr.mxu0 0.0
  %189 = vmatpush1.msra.mxu0 0.0
  %190 = vmatprep.subr.mxu0 0.0
  %191 = vmatpush1.msra.mxu0 0.0
  %192 = vmatprep.subr.mxu0 0.0
  %193 = vmatpush1.msra.mxu0 0.0
  %194 = vmatprep.subr.mxu0 0.0
  %195 = vmatpush1.msra.mxu0 0.0
  %196 = vmatprep.subr.mxu0 0.0
  %197 = vmatpush1.msra.mxu0 0.0
  %198 = vmatprep.subr.mxu0 0.0
  %199 = vmatpush1.msra.mxu0 0.0
  %200 = vmatprep.subr.mxu0 0.0
  %201 = vmatpush1.msra.mxu0 0.0
  %202 = vmatprep.subr.mxu0 0.0
  %203 = vmatpush1.msra.mxu0 0.0
  %204 = vmatprep.subr.mxu0 0.0
  %205 = vmatpush1.msra.mxu0 0.0
  %206 = vmatprep.subr.mxu0 0.0
  %207 = vmatpush1.msra.mxu0 0.0
  %208 = vmatprep.subr.mxu0 0.0
  %209 = vmatpush1.msra.mxu0 0.0
  %210 = vmatprep.subr.mxu0 0.0
  %211 = vmatpush1.msra.mxu0 0.0
  %212 = vmatprep.subr.mxu0 0.0
  %213 = vmatpush1.msra.mxu0 0.0
  %214 = vmatprep.subr.mxu0 0.0
  %215 = vmatpush1.msra.mxu0 0.0
  %216 = vmatprep.subr.mxu0 0.0
  %217 = vmatpush1.msra.mxu0 0.0
  %218 = vmatprep.subr.mxu0 0.0
  %219 = vmatpush1.msra.mxu0 0.0
  %220 = vmatprep.subr.mxu0 0.0
  %221 = vmatpush1.msra.mxu0 0.0
  %222 = vmatprep.subr.mxu0 0.0
  %223 = vmatpush1.msra.mxu0 0.0
  %224 = vmatprep.subr.mxu0 0.0
  %225 = vmatpush1.msra.mxu0 0.0
  %226 = vmatprep.subr.mxu0 0.0
  %227 = vmatpush1.msra.mxu0 0.0
  %228 = vmatprep.subr.mxu0 0.0
  %229 = vmatpush1.msra.mxu0 0.0
  %230 = vmatprep.subr.mxu0 0.0
  %231 = vmatpush1.msra.mxu0 0.0
  %232 = vmatprep.subr.mxu0 0.0
  %233 = vmatpush1.msra.mxu0 0.0
  %234 = vmatprep.subr.mxu0 0.0
  %235 = vmatpush1.msra.mxu0 0.0
  %236 = vmatprep.subr.mxu0 0.0
  %237 = vmatpush1.msra.mxu0 0.0
  %238 = vmatprep.subr.mxu0 0.0
  %239 = vmatpush1.msra.mxu0 0.0
  %240 = vmatprep.subr.mxu0 0.0
  %241 = vmatpush1.msra.mxu0 0.0
  %242 = vmatprep.subr.mxu0 0.0
  %243 = vmatpush1.msra.mxu0 0.0
  %244 = vmatprep.subr.mxu0 0.0
  %245 = vmatpush1.msra.mxu0 0.0
  %246 = vmatprep.mubr.f32.mxu0 0.0
  %247 = vmatmul.mubr.f32.gmra.mrb[0].mxu0 %v177
  %v248 = vpop.f32.mrb[0].mxu0
  %v249 = vadd.f32 0.0, %v248
  %v250 = vpop.f32.mrb[0].mxu0
  %v251 = vadd.f32 0.0, %v250
  %252 = vmatprep.mubr.f32.mxu0 0.0
  %253 = vmatmul.mubr.f32.gmra.mrb[0].mxu0 %v180
  %v254 = vpop.f32.mrb[0].mxu0
  %v255 = vadd.f32 0.0, %v254
  %v256 = vpop.f32.mrb[0].mxu0
  %v257 = vadd.f32 0.0, %v256
  %258 = vdwg.mxu0
  %v259 = vadd.f32 %v160, %v249
  %v260 = vadd.f32 %v161, %v251
  %v261 = vadd.f32 %v162, %v255
  %v262 = vadd.f32 %v163, %v257
  %263 = vrot.lane.b32.xlu0 %v14, 15
  %v264 = vpop.permute.xlu0 %263
  %265 = vrot.lane.b32.xlu0 %v15, 15
  %v266 = vpop.permute.xlu0 %265
  %vm267 = vcmp.lt.s32.totalorder %v17, 15
  %v268 = vsel %vm267, %v264, %v266
  %v269 = vsel %vm267, %v266, %v264
  %vm270 = vmand %vm43, %vm49
  %vm271 = vmand %vm44, %vm50
  %v272 = vsel %vm270, %v269, 0.0
  %v273 = vsel %vm271, %v268, 0.0
  %s274 = scalar_lea.vmem %s1, 32
  %v275 = vld [vmem:[%s274] sm:$0xff]
  %v276 = vld [vmem:[%s274 + $0x8] sm:$0xff]
  %v278 = vsel %vm76, %v275, 0
  %v281 = vsel %vm76, %v276, 0
  %283 = vmatprep.subr.mxu0 %v273
  %284 = vmatpush1.msra.mxu0 %v272
  %285 = vmatprep.subr.mxu0 0.0
  %286 = vmatpush1.msra.mxu0 0.0
  %287 = vmatprep.subr.mxu0 0.0
  %288 = vmatpush1.msra.mxu0 0.0
  %289 = vmatprep.subr.mxu0 0.0
  %290 = vmatpush1.msra.mxu0 0.0
  %291 = vmatprep.subr.mxu0 0.0
  %292 = vmatpush1.msra.mxu0 0.0
  %293 = vmatprep.subr.mxu0 0.0
  %294 = vmatpush1.msra.mxu0 0.0
  %295 = vmatprep.subr.mxu0 0.0
  %296 = vmatpush1.msra.mxu0 0.0
  %297 = vmatprep.subr.mxu0 0.0
  %298 = vmatpush1.msra.mxu0 0.0
  %299 = vmatprep.subr.mxu0 0.0
  %300 = vmatpush1.msra.mxu0 0.0
  %301 = vmatprep.subr.mxu0 0.0
  %302 = vmatpush1.msra.mxu0 0.0
  %303 = vmatprep.subr.mxu0 0.0
  %304 = vmatpush1.msra.mxu0 0.0
  %305 = vmatprep.subr.mxu0 0.0
  %306 = vmatpush1.msra.mxu0 0.0
  %307 = vmatprep.subr.mxu0 0.0
  %308 = vmatpush1.msra.mxu0 0.0
  %309 = vmatprep.subr.mxu0 0.0
  %310 = vmatpush1.msra.mxu0 0.0
  %311 = vmatprep.subr.mxu0 0.0
  %312 = vmatpush1.msra.mxu0 0.0
  %313 = vmatprep.subr.mxu0 0.0
  %314 = vmatpush1.msra.mxu0 0.0
  %315 = vmatprep.subr.mxu0 0.0
  %316 = vmatpush1.msra.mxu0 0.0
  %317 = vmatprep.subr.mxu0 0.0
  %318 = vmatpush1.msra.mxu0 0.0
  %319 = vmatprep.subr.mxu0 0.0
  %320 = vmatpush1.msra.mxu0 0.0
  %321 = vmatprep.subr.mxu0 0.0
  %322 = vmatpush1.msra.mxu0 0.0
  %323 = vmatprep.subr.mxu0 0.0
  %324 = vmatpush1.msra.mxu0 0.0
  %325 = vmatprep.subr.mxu0 0.0
  %326 = vmatpush1.msra.mxu0 0.0
  %327 = vmatprep.subr.mxu0 0.0
  %328 = vmatpush1.msra.mxu0 0.0
  %329 = vmatprep.subr.mxu0 0.0
  %330 = vmatpush1.msra.mxu0 0.0
  %331 = vmatprep.subr.mxu0 0.0
  %332 = vmatpush1.msra.mxu0 0.0
  %333 = vmatprep.subr.mxu0 0.0
  %334 = vmatpush1.msra.mxu0 0.0
  %335 = vmatprep.subr.mxu0 0.0
  %336 = vmatpush1.msra.mxu0 0.0
  %337 = vmatprep.subr.mxu0 0.0
  %338 = vmatpush1.msra.mxu0 0.0
  %339 = vmatprep.subr.mxu0 0.0
  %340 = vmatpush1.msra.mxu0 0.0
  %341 = vmatprep.subr.mxu0 0.0
  %342 = vmatpush1.msra.mxu0 0.0
  %343 = vmatprep.subr.mxu0 0.0
  %344 = vmatpush1.msra.mxu0 0.0
  %345 = vmatprep.subr.mxu0 0.0
  %346 = vmatpush1.msra.mxu0 0.0
  %347 = vmatprep.mubr.f32.mxu0 0.0
  %348 = vmatmul.mubr.f32.gmra.mrb[0].mxu0 %v278
  %v349 = vpop.f32.mrb[0].mxu0
  %v350 = vadd.f32 0.0, %v349
  %v351 = vpop.f32.mrb[0].mxu0
  %v352 = vadd.f32 0.0, %v351
  %353 = vmatprep.mubr.f32.mxu0 0.0
  %354 = vmatmul.mubr.f32.gmra.mrb[0].mxu0 %v281
  %v355 = vpop.f32.mrb[0].mxu0
  %v356 = vadd.f32 0.0, %v355
  %v357 = vpop.f32.mrb[0].mxu0
  %v358 = vadd.f32 0.0, %v357
  %359 = vdwg.mxu0
  %v360 = vadd.f32 %v259, %v350
  %v361 = vadd.f32 %v260, %v352
  %v362 = vadd.f32 %v261, %v356
  %v363 = vadd.f32 %v262, %v358
  %364 = vrot.lane.b32.xlu0 %v14, 1
  %v365 = vpop.permute.xlu0 %364
  %366 = vrot.lane.b32.xlu0 %v15, 1
  %v367 = vpop.permute.xlu0 %366
  %vm368 = vcmp.lt.s32.totalorder %v17, 1
  %v369 = vsel %vm368, %v365, %v367
  %v370 = vsel %vm368, %v367, %v365
  %v371 = vsel %vm47, %v370, 0.0
  %v372 = vsel %vm48, %v369, 0.0
  %s373 = scalar_lea.vmem %s1, 48
  %v374 = vld [vmem:[%s373] sm:$0xff]
  %v375 = vld [vmem:[%s373 + $0x8] sm:$0xff]
  %v377 = vsel %vm76, %v374, 0
  %v380 = vsel %vm76, %v375, 0
  %382 = vmatprep.subr.mxu0 %v372
  %383 = vmatpush1.msra.mxu0 %v371
  %384 = vmatprep.subr.mxu0 0.0
  %385 = vmatpush1.msra.mxu0 0.0
  %386 = vmatprep.subr.mxu0 0.0
  %387 = vmatpush1.msra.mxu0 0.0
  %388 = vmatprep.subr.mxu0 0.0
  %389 = vmatpush1.msra.mxu0 0.0
  %390 = vmatprep.subr.mxu0 0.0
  %391 = vmatpush1.msra.mxu0 0.0
  %392 = vmatprep.subr.mxu0 0.0
  %393 = vmatpush1.msra.mxu0 0.0
  %394 = vmatprep.subr.mxu0 0.0
  %395 = vmatpush1.msra.mxu0 0.0
  %396 = vmatprep.subr.mxu0 0.0
  %397 = vmatpush1.msra.mxu0 0.0
  %398 = vmatprep.subr.mxu0 0.0
  %399 = vmatpush1.msra.mxu0 0.0
  %400 = vmatprep.subr.mxu0 0.0
  %401 = vmatpush1.msra.mxu0 0.0
  %402 = vmatprep.subr.mxu0 0.0
  %403 = vmatpush1.msra.mxu0 0.0
  %404 = vmatprep.subr.mxu0 0.0
  %405 = vmatpush1.msra.mxu0 0.0
  %406 = vmatprep.subr.mxu0 0.0
  %407 = vmatpush1.msra.mxu0 0.0
  %408 = vmatprep.subr.mxu0 0.0
  %409 = vmatpush1.msra.mxu0 0.0
  %410 = vmatprep.subr.mxu0 0.0
  %411 = vmatpush1.msra.mxu0 0.0
  %412 = vmatprep.subr.mxu0 0.0
  %413 = vmatpush1.msra.mxu0 0.0
  %414 = vmatprep.subr.mxu0 0.0
  %415 = vmatpush1.msra.mxu0 0.0
  %416 = vmatprep.subr.mxu0 0.0
  %417 = vmatpush1.msra.mxu0 0.0
  %418 = vmatprep.subr.mxu0 0.0
  %419 = vmatpush1.msra.mxu0 0.0
  %420 = vmatprep.subr.mxu0 0.0
  %421 = vmatpush1.msra.mxu0 0.0
  %422 = vmatprep.subr.mxu0 0.0
  %423 = vmatpush1.msra.mxu0 0.0
  %424 = vmatprep.subr.mxu0 0.0
  %425 = vmatpush1.msra.mxu0 0.0
  %426 = vmatprep.subr.mxu0 0.0
  %427 = vmatpush1.msra.mxu0 0.0
  %428 = vmatprep.subr.mxu0 0.0
  %429 = vmatpush1.msra.mxu0 0.0
  %430 = vmatprep.subr.mxu0 0.0
  %431 = vmatpush1.msra.mxu0 0.0
  %432 = vmatprep.subr.mxu0 0.0
  %433 = vmatpush1.msra.mxu0 0.0
  %434 = vmatprep.subr.mxu0 0.0
  %435 = vmatpush1.msra.mxu0 0.0
  %436 = vmatprep.subr.mxu0 0.0
  %437 = vmatpush1.msra.mxu0 0.0
  %438 = vmatprep.subr.mxu0 0.0
  %439 = vmatpush1.msra.mxu0 0.0
  %440 = vmatprep.subr.mxu0 0.0
  %441 = vmatpush1.msra.mxu0 0.0
  %442 = vmatprep.subr.mxu0 0.0
  %443 = vmatpush1.msra.mxu0 0.0
  %444 = vmatprep.subr.mxu0 0.0
  %445 = vmatpush1.msra.mxu0 0.0
  %446 = vmatprep.mubr.f32.mxu0 0.0
  %447 = vmatmul.mubr.f32.gmra.mrb[0].mxu0 %v377
  %v448 = vpop.f32.mrb[0].mxu0
  %v449 = vadd.f32 0.0, %v448
  %v450 = vpop.f32.mrb[0].mxu0
  %v451 = vadd.f32 0.0, %v450
  %452 = vmatprep.mubr.f32.mxu0 0.0
  %453 = vmatmul.mubr.f32.gmra.mrb[0].mxu0 %v380
  %v454 = vpop.f32.mrb[0].mxu0
  %v455 = vadd.f32 0.0, %v454
  %v456 = vpop.f32.mrb[0].mxu0
  %v457 = vadd.f32 0.0, %v456
  %458 = vdwg.mxu0
  %v459 = vadd.f32 %v360, %v449
  %v460 = vadd.f32 %v361, %v451
  %v461 = vadd.f32 %v362, %v455
  %v462 = vadd.f32 %v363, %v457
  %s463 = scalar_lea.vmem %s1, 64
  %v464 = vld [vmem:[%s463] sm:$0xff]
  %v465 = vld [vmem:[%s463 + $0x8] sm:$0xff]
  %v467 = vsel %vm76, %v464, 0
  %v470 = vsel %vm76, %v465, 0
  %472 = vmatprep.subr.mxu0 %v15
  %473 = vmatpush1.msra.mxu0 %v14
  %474 = vmatprep.subr.mxu0 0.0
  %475 = vmatpush1.msra.mxu0 0.0
  %476 = vmatprep.subr.mxu0 0.0
  %477 = vmatpush1.msra.mxu0 0.0
  %478 = vmatprep.subr.mxu0 0.0
  %479 = vmatpush1.msra.mxu0 0.0
  %480 = vmatprep.subr.mxu0 0.0
  %481 = vmatpush1.msra.mxu0 0.0
  %482 = vmatprep.subr.mxu0 0.0
  %483 = vmatpush1.msra.mxu0 0.0
  %484 = vmatprep.subr.mxu0 0.0
  %485 = vmatpush1.msra.mxu0 0.0
  %486 = vmatprep.subr.mxu0 0.0
  %487 = vmatpush1.msra.mxu0 0.0
  %488 = vmatprep.subr.mxu0 0.0
  %489 = vmatpush1.msra.mxu0 0.0
  %490 = vmatprep.subr.mxu0 0.0
  %491 = vmatpush1.msra.mxu0 0.0
  %492 = vmatprep.subr.mxu0 0.0
  %493 = vmatpush1.msra.mxu0 0.0
  %494 = vmatprep.subr.mxu0 0.0
  %495 = vmatpush1.msra.mxu0 0.0
  %496 = vmatprep.subr.mxu0 0.0
  %497 = vmatpush1.msra.mxu0 0.0
  %498 = vmatprep.subr.mxu0 0.0
  %499 = vmatpush1.msra.mxu0 0.0
  %500 = vmatprep.subr.mxu0 0.0
  %501 = vmatpush1.msra.mxu0 0.0
  %502 = vmatprep.subr.mxu0 0.0
  %503 = vmatpush1.msra.mxu0 0.0
  %504 = vmatprep.subr.mxu0 0.0
  %505 = vmatpush1.msra.mxu0 0.0
  %506 = vmatprep.subr.mxu0 0.0
  %507 = vmatpush1.msra.mxu0 0.0
  %508 = vmatprep.subr.mxu0 0.0
  %509 = vmatpush1.msra.mxu0 0.0
  %510 = vmatprep.subr.mxu0 0.0
  %511 = vmatpush1.msra.mxu0 0.0
  %512 = vmatprep.subr.mxu0 0.0
  %513 = vmatpush1.msra.mxu0 0.0
  %514 = vmatprep.subr.mxu0 0.0
  %515 = vmatpush1.msra.mxu0 0.0
  %516 = vmatprep.subr.mxu0 0.0
  %517 = vmatpush1.msra.mxu0 0.0
  %518 = vmatprep.subr.mxu0 0.0
  %519 = vmatpush1.msra.mxu0 0.0
  %520 = vmatprep.subr.mxu0 0.0
  %521 = vmatpush1.msra.mxu0 0.0
  %522 = vmatprep.subr.mxu0 0.0
  %523 = vmatpush1.msra.mxu0 0.0
  %524 = vmatprep.subr.mxu0 0.0
  %525 = vmatpush1.msra.mxu0 0.0
  %526 = vmatprep.subr.mxu0 0.0
  %527 = vmatpush1.msra.mxu0 0.0
  %528 = vmatprep.subr.mxu0 0.0
  %529 = vmatpush1.msra.mxu0 0.0
  %530 = vmatprep.subr.mxu0 0.0
  %531 = vmatpush1.msra.mxu0 0.0
  %532 = vmatprep.subr.mxu0 0.0
  %533 = vmatpush1.msra.mxu0 0.0
  %534 = vmatprep.subr.mxu0 0.0
  %535 = vmatpush1.msra.mxu0 0.0
  %536 = vmatprep.mubr.f32.mxu0 0.0
  %537 = vmatmul.mubr.f32.gmra.mrb[0].mxu0 %v467
  %v538 = vpop.f32.mrb[0].mxu0
  %v539 = vadd.f32 0.0, %v538
  %v540 = vpop.f32.mrb[0].mxu0
  %v541 = vadd.f32 0.0, %v540
  %542 = vmatprep.mubr.f32.mxu0 0.0
  %543 = vmatmul.mubr.f32.gmra.mrb[0].mxu0 %v470
  %v544 = vpop.f32.mrb[0].mxu0
  %v545 = vadd.f32 0.0, %v544
  %v546 = vpop.f32.mrb[0].mxu0
  %v547 = vadd.f32 0.0, %v546
  %548 = vdwg.mxu0
  %v549 = vadd.f32 %v459, %v539
  %v550 = vadd.f32 %v460, %v541
  %v551 = vadd.f32 %v461, %v545
  %v552 = vadd.f32 %v462, %v547
  %553 = vrot.lane.b32.xlu0 %v14, 127
  %v554 = vpop.permute.xlu0 %553
  %555 = vrot.lane.b32.xlu0 %v15, 127
  %v556 = vpop.permute.xlu0 %555
  %vm557 = vcmp.lt.s32.totalorder %v17, 127
  %v558 = vsel %vm557, %v554, %v556
  %v559 = vsel %vm557, %v556, %v554
  %v560 = vsel %vm49, %v558, 0.0
  %v561 = vsel %vm50, %v559, 0.0
  %s562 = scalar_lea.vmem %s1, 80
  %v563 = vld [vmem:[%s562] sm:$0xff]
  %v564 = vld [vmem:[%s562 + $0x8] sm:$0xff]
  %v566 = vsel %vm76, %v563, 0
  %v569 = vsel %vm76, %v564, 0
  %571 = vmatprep.subr.mxu0 %v561
  %572 = vmatpush1.msra.mxu0 %v560
  %573 = vmatprep.subr.mxu0 0.0
  %574 = vmatpush1.msra.mxu0 0.0
  %575 = vmatprep.subr.mxu0 0.0
  %576 = vmatpush1.msra.mxu0 0.0
  %577 = vmatprep.subr.mxu0 0.0
  %578 = vmatpush1.msra.mxu0 0.0
  %579 = vmatprep.subr.mxu0 0.0
  %580 = vmatpush1.msra.mxu0 0.0
  %581 = vmatprep.subr.mxu0 0.0
  %582 = vmatpush1.msra.mxu0 0.0
  %583 = vmatprep.subr.mxu0 0.0
  %584 = vmatpush1.msra.mxu0 0.0
  %585 = vmatprep.subr.mxu0 0.0
  %586 = vmatpush1.msra.mxu0 0.0
  %587 = vmatprep.subr.mxu0 0.0
  %588 = vmatpush1.msra.mxu0 0.0
  %589 = vmatprep.subr.mxu0 0.0
  %590 = vmatpush1.msra.mxu0 0.0
  %591 = vmatprep.subr.mxu0 0.0
  %592 = vmatpush1.msra.mxu0 0.0
  %593 = vmatprep.subr.mxu0 0.0
  %594 = vmatpush1.msra.mxu0 0.0
  %595 = vmatprep.subr.mxu0 0.0
  %596 = vmatpush1.msra.mxu0 0.0
  %597 = vmatprep.subr.mxu0 0.0
  %598 = vmatpush1.msra.mxu0 0.0
  %599 = vmatprep.subr.mxu0 0.0
  %600 = vmatpush1.msra.mxu0 0.0
  %601 = vmatprep.subr.mxu0 0.0
  %602 = vmatpush1.msra.mxu0 0.0
  %603 = vmatprep.subr.mxu0 0.0
  %604 = vmatpush1.msra.mxu0 0.0
  %605 = vmatprep.subr.mxu0 0.0
  %606 = vmatpush1.msra.mxu0 0.0
  %607 = vmatprep.subr.mxu0 0.0
  %608 = vmatpush1.msra.mxu0 0.0
  %609 = vmatprep.subr.mxu0 0.0
  %610 = vmatpush1.msra.mxu0 0.0
  %611 = vmatprep.subr.mxu0 0.0
  %612 = vmatpush1.msra.mxu0 0.0
  %613 = vmatprep.subr.mxu0 0.0
  %614 = vmatpush1.msra.mxu0 0.0
  %615 = vmatprep.subr.mxu0 0.0
  %616 = vmatpush1.msra.mxu0 0.0
  %617 = vmatprep.subr.mxu0 0.0
  %618 = vmatpush1.msra.mxu0 0.0
  %619 = vmatprep.subr.mxu0 0.0
  %620 = vmatpush1.msra.mxu0 0.0
  %621 = vmatprep.subr.mxu0 0.0
  %622 = vmatpush1.msra.mxu0 0.0
  %623 = vmatprep.subr.mxu0 0.0
  %624 = vmatpush1.msra.mxu0 0.0
  %625 = vmatprep.subr.mxu0 0.0
  %626 = vmatpush1.msra.mxu0 0.0
  %627 = vmatprep.subr.mxu0 0.0
  %628 = vmatpush1.msra.mxu0 0.0
  %629 = vmatprep.subr.mxu0 0.0
  %630 = vmatpush1.msra.mxu0 0.0
  %631 = vmatprep.subr.mxu0 0.0
  %632 = vmatpush1.msra.mxu0 0.0
  %633 = vmatprep.subr.mxu0 0.0
  %634 = vmatpush1.msra.mxu0 0.0
  %635 = vmatprep.mubr.f32.mxu0 0.0
  %636 = vmatmul.mubr.f32.gmra.mrb[0].mxu0 %v566
  %v637 = vpop.f32.mrb[0].mxu0
  %v638 = vadd.f32 0.0, %v637
  %v639 = vpop.f32.mrb[0].mxu0
  %v640 = vadd.f32 0.0, %v639
  %641 = vmatprep.mubr.f32.mxu0 0.0
  %642 = vmatmul.mubr.f32.gmra.mrb[0].mxu0 %v569
  %v643 = vpop.f32.mrb[0].mxu0
  %v644 = vadd.f32 0.0, %v643
  %v645 = vpop.f32.mrb[0].mxu0
  %v646 = vadd.f32 0.0, %v645
  %647 = vdwg.mxu0
  %v648 = vadd.f32 %v549, %v638
  %v649 = vadd.f32 %v550, %v640
  %v650 = vadd.f32 %v551, %v644
  %v651 = vadd.f32 %v552, %v646
  %652 = vrot.lane.b32.xlu0 %v14, 113
  %v653 = vpop.permute.xlu0 %652
  %654 = vrot.lane.b32.xlu0 %v15, 113
  %v655 = vpop.permute.xlu0 %654
  %vm656 = vcmp.lt.s32.totalorder %v17, 113
  %v657 = vsel %vm656, %v653, %v655
  %v658 = vsel %vm656, %v655, %v653
  %vm659 = vmand %vm45, %vm47
  %vm660 = vmand %vm46, %vm48
  %v661 = vsel %vm659, %v657, 0.0
  %v662 = vsel %vm660, %v658, 0.0
  %s663 = scalar_lea.vmem %s1, 96
  %v664 = vld [vmem:[%s663] sm:$0xff]
  %v665 = vld [vmem:[%s663 + $0x8] sm:$0xff]
  %v667 = vsel %vm76, %v664, 0
  %v670 = vsel %vm76, %v665, 0
  %672 = vmatprep.subr.mxu0 %v662
  %673 = vmatpush1.msra.mxu0 %v661
  %674 = vmatprep.subr.mxu0 0.0
  %675 = vmatpush1.msra.mxu0 0.0
  %676 = vmatprep.subr.mxu0 0.0
  %677 = vmatpush1.msra.mxu0 0.0
  %678 = vmatprep.subr.mxu0 0.0
  %679 = vmatpush1.msra.mxu0 0.0
  %680 = vmatprep.subr.mxu0 0.0
  %681 = vmatpush1.msra.mxu0 0.0
  %682 = vmatprep.subr.mxu0 0.0
  %683 = vmatpush1.msra.mxu0 0.0
  %684 = vmatprep.subr.mxu0 0.0
  %685 = vmatpush1.msra.mxu0 0.0
  %686 = vmatprep.subr.mxu0 0.0
  %687 = vmatpush1.msra.mxu0 0.0
  %688 = vmatprep.subr.mxu0 0.0
  %689 = vmatpush1.msra.mxu0 0.0
  %690 = vmatprep.subr.mxu0 0.0
  %691 = vmatpush1.msra.mxu0 0.0
  %692 = vmatprep.subr.mxu0 0.0
  %693 = vmatpush1.msra.mxu0 0.0
  %694 = vmatprep.subr.mxu0 0.0
  %695 = vmatpush1.msra.mxu0 0.0
  %696 = vmatprep.subr.mxu0 0.0
  %697 = vmatpush1.msra.mxu0 0.0
  %698 = vmatprep.subr.mxu0 0.0
  %699 = vmatpush1.msra.mxu0 0.0
  %700 = vmatprep.subr.mxu0 0.0
  %701 = vmatpush1.msra.mxu0 0.0
  %702 = vmatprep.subr.mxu0 0.0
  %703 = vmatpush1.msra.mxu0 0.0
  %704 = vmatprep.subr.mxu0 0.0
  %705 = vmatpush1.msra.mxu0 0.0
  %706 = vmatprep.subr.mxu0 0.0
  %707 = vmatpush1.msra.mxu0 0.0
  %708 = vmatprep.subr.mxu0 0.0
  %709 = vmatpush1.msra.mxu0 0.0
  %710 = vmatprep.subr.mxu0 0.0
  %711 = vmatpush1.msra.mxu0 0.0
  %712 = vmatprep.subr.mxu0 0.0
  %713 = vmatpush1.msra.mxu0 0.0
  %714 = vmatprep.subr.mxu0 0.0
  %715 = vmatpush1.msra.mxu0 0.0
  %716 = vmatprep.subr.mxu0 0.0
  %717 = vmatpush1.msra.mxu0 0.0
  %718 = vmatprep.subr.mxu0 0.0
  %719 = vmatpush1.msra.mxu0 0.0
  %720 = vmatprep.subr.mxu0 0.0
  %721 = vmatpush1.msra.mxu0 0.0
  %722 = vmatprep.subr.mxu0 0.0
  %723 = vmatpush1.msra.mxu0 0.0
  %724 = vmatprep.subr.mxu0 0.0
  %725 = vmatpush1.msra.mxu0 0.0
  %726 = vmatprep.subr.mxu0 0.0
  %727 = vmatpush1.msra.mxu0 0.0
  %728 = vmatprep.subr.mxu0 0.0
  %729 = vmatpush1.msra.mxu0 0.0
  %730 = vmatprep.subr.mxu0 0.0
  %731 = vmatpush1.msra.mxu0 0.0
  %732 = vmatprep.subr.mxu0 0.0
  %733 = vmatpush1.msra.mxu0 0.0
  %734 = vmatprep.subr.mxu0 0.0
  %735 = vmatpush1.msra.mxu0 0.0
  %736 = vmatprep.mubr.f32.mxu0 0.0
  %737 = vmatmul.mubr.f32.gmra.mrb[0].mxu0 %v667
  %v738 = vpop.f32.mrb[0].mxu0
  %v739 = vadd.f32 0.0, %v738
  %v740 = vpop.f32.mrb[0].mxu0
  %v741 = vadd.f32 0.0, %v740
  %742 = vmatprep.mubr.f32.mxu0 0.0
  %743 = vmatmul.mubr.f32.gmra.mrb[0].mxu0 %v670
  %v744 = vpop.f32.mrb[0].mxu0
  %v745 = vadd.f32 0.0, %v744
  %v746 = vpop.f32.mrb[0].mxu0
  %v747 = vadd.f32 0.0, %v746
  %748 = vdwg.mxu0
  %v749 = vadd.f32 %v648, %v739
  %v750 = vadd.f32 %v649, %v741
  %v751 = vadd.f32 %v650, %v745
  %v752 = vadd.f32 %v651, %v747
  %753 = vrot.lane.b32.xlu0 %v14, 112
  %v754 = vpop.permute.xlu0 %753
  %755 = vrot.lane.b32.xlu0 %v15, 112
  %v756 = vpop.permute.xlu0 %755
  %vm757 = vcmp.lt.s32.totalorder %v17, 112
  %v758 = vsel %vm757, %v754, %v756
  %v759 = vsel %vm757, %v756, %v754
  %v760 = vsel %vm45, %v758, 0.0
  %v761 = vsel %vm46, %v759, 0.0
  %s762 = scalar_lea.vmem %s1, 112
  %v763 = vld [vmem:[%s762] sm:$0xff]
  %v764 = vld [vmem:[%s762 + $0x8] sm:$0xff]
  %v766 = vsel %vm76, %v763, 0
  %v769 = vsel %vm76, %v764, 0
  %771 = vmatprep.subr.mxu0 %v761
  %772 = vmatpush1.msra.mxu0 %v760
  %773 = vmatprep.subr.mxu0 0.0
  %774 = vmatpush1.msra.mxu0 0.0
  %775 = vmatprep.subr.mxu0 0.0
  %776 = vmatpush1.msra.mxu0 0.0
  %777 = vmatprep.subr.mxu0 0.0
  %778 = vmatpush1.msra.mxu0 0.0
  %779 = vmatprep.subr.mxu0 0.0
  %780 = vmatpush1.msra.mxu0 0.0
  %781 = vmatprep.subr.mxu0 0.0
  %782 = vmatpush1.msra.mxu0 0.0
  %783 = vmatprep.subr.mxu0 0.0
  %784 = vmatpush1.msra.mxu0 0.0
  %785 = vmatprep.subr.mxu0 0.0
  %786 = vmatpush1.msra.mxu0 0.0
  %787 = vmatprep.subr.mxu0 0.0
  %788 = vmatpush1.msra.mxu0 0.0
  %789 = vmatprep.subr.mxu0 0.0
  %790 = vmatpush1.msra.mxu0 0.0
  %791 = vmatprep.subr.mxu0 0.0
  %792 = vmatpush1.msra.mxu0 0.0
  %793 = vmatprep.subr.mxu0 0.0
  %794 = vmatpush1.msra.mxu0 0.0
  %795 = vmatprep.subr.mxu0 0.0
  %796 = vmatpush1.msra.mxu0 0.0
  %797 = vmatprep.subr.mxu0 0.0
  %798 = vmatpush1.msra.mxu0 0.0
  %799 = vmatprep.subr.mxu0 0.0
  %800 = vmatpush1.msra.mxu0 0.0
  %801 = vmatprep.subr.mxu0 0.0
  %802 = vmatpush1.msra.mxu0 0.0
  %803 = vmatprep.subr.mxu0 0.0
  %804 = vmatpush1.msra.mxu0 0.0
  %805 = vmatprep.subr.mxu0 0.0
  %806 = vmatpush1.msra.mxu0 0.0
  %807 = vmatprep.subr.mxu0 0.0
  %808 = vmatpush1.msra.mxu0 0.0
  %809 = vmatprep.subr.mxu0 0.0
  %810 = vmatpush1.msra.mxu0 0.0
  %811 = vmatprep.subr.mxu0 0.0
  %812 = vmatpush1.msra.mxu0 0.0
  %813 = vmatprep.subr.mxu0 0.0
  %814 = vmatpush1.msra.mxu0 0.0
  %815 = vmatprep.subr.mxu0 0.0
  %816 = vmatpush1.msra.mxu0 0.0
  %817 = vmatprep.subr.mxu0 0.0
  %818 = vmatpush1.msra.mxu0 0.0
  %819 = vmatprep.subr.mxu0 0.0
  %820 = vmatpush1.msra.mxu0 0.0
  %821 = vmatprep.subr.mxu0 0.0
  %822 = vmatpush1.msra.mxu0 0.0
  %823 = vmatprep.subr.mxu0 0.0
  %824 = vmatpush1.msra.mxu0 0.0
  %825 = vmatprep.subr.mxu0 0.0
  %826 = vmatpush1.msra.mxu0 0.0
  %827 = vmatprep.subr.mxu0 0.0
  %828 = vmatpush1.msra.mxu0 0.0
  %829 = vmatprep.subr.mxu0 0.0
  %830 = vmatpush1.msra.mxu0 0.0
  %831 = vmatprep.subr.mxu0 0.0
  %832 = vmatpush1.msra.mxu0 0.0
  %833 = vmatprep.subr.mxu0 0.0
  %834 = vmatpush1.msra.mxu0 0.0
  %835 = vmatprep.mubr.f32.mxu0 0.0
  %836 = vmatmul.mubr.f32.gmra.mrb[0].mxu0 %v766
  %v837 = vpop.f32.mrb[0].mxu0
  %v838 = vadd.f32 0.0, %v837
  %v839 = vpop.f32.mrb[0].mxu0
  %v840 = vadd.f32 0.0, %v839
  %841 = vmatprep.mubr.f32.mxu0 0.0
  %842 = vmatmul.mubr.f32.gmra.mrb[0].mxu0 %v769
  %v843 = vpop.f32.mrb[0].mxu0
  %v844 = vadd.f32 0.0, %v843
  %v845 = vpop.f32.mrb[0].mxu0
  %v846 = vadd.f32 0.0, %v845
  %847 = vdwg.mxu0
  %v848 = vadd.f32 %v749, %v838
  %v849 = vadd.f32 %v750, %v840
  %v850 = vadd.f32 %v751, %v844
  %v851 = vadd.f32 %v752, %v846
  %852 = vrot.lane.b32.xlu0 %v14, 111
  %v853 = vpop.permute.xlu0 %852
  %854 = vrot.lane.b32.xlu0 %v15, 111
  %v855 = vpop.permute.xlu0 %854
  %vm856 = vcmp.lt.s32.totalorder %v17, 111
  %v857 = vsel %vm856, %v853, %v855
  %v858 = vsel %vm856, %v855, %v853
  %vm859 = vmand %vm45, %vm49
  %vm860 = vmand %vm46, %vm50
  %v861 = vsel %vm859, %v857, 0.0
  %v862 = vsel %vm860, %v858, 0.0
  %s863 = scalar_lea.vmem %s1, 128
  %v864 = vld [vmem:[%s863] sm:$0xff]
  %v865 = vld [vmem:[%s863 + $0x8] sm:$0xff]
  %v867 = vsel %vm76, %v864, 0
  %v870 = vsel %vm76, %v865, 0
  %872 = vmatprep.subr.mxu0 %v862
  %873 = vmatpush1.msra.mxu0 %v861
  %874 = vmatprep.subr.mxu0 0.0
  %875 = vmatpush1.msra.mxu0 0.0
  %876 = vmatprep.subr.mxu0 0.0
  %877 = vmatpush1.msra.mxu0 0.0
  %878 = vmatprep.subr.mxu0 0.0
  %879 = vmatpush1.msra.mxu0 0.0
  %880 = vmatprep.subr.mxu0 0.0
  %881 = vmatpush1.msra.mxu0 0.0
  %882 = vmatprep.subr.mxu0 0.0
  %883 = vmatpush1.msra.mxu0 0.0
  %884 = vmatprep.subr.mxu0 0.0
  %885 = vmatpush1.msra.mxu0 0.0
  %886 = vmatprep.subr.mxu0 0.0
  %887 = vmatpush1.msra.mxu0 0.0
  %888 = vmatprep.subr.mxu0 0.0
  %889 = vmatpush1.msra.mxu0 0.0
  %890 = vmatprep.subr.mxu0 0.0
  %891 = vmatpush1.msra.mxu0 0.0
  %892 = vmatprep.subr.mxu0 0.0
  %893 = vmatpush1.msra.mxu0 0.0
  %894 = vmatprep.subr.mxu0 0.0
  %895 = vmatpush1.msra.mxu0 0.0
  %896 = vmatprep.subr.mxu0 0.0
  %897 = vmatpush1.msra.mxu0 0.0
  %898 = vmatprep.subr.mxu0 0.0
  %899 = vmatpush1.msra.mxu0 0.0
  %900 = vmatprep.subr.mxu0 0.0
  %901 = vmatpush1.msra.mxu0 0.0
  %902 = vmatprep.subr.mxu0 0.0
  %903 = vmatpush1.msra.mxu0 0.0
  %904 = vmatprep.subr.mxu0 0.0
  %905 = vmatpush1.msra.mxu0 0.0
  %906 = vmatprep.subr.mxu0 0.0
  %907 = vmatpush1.msra.mxu0 0.0
  %908 = vmatprep.subr.mxu0 0.0
  %909 = vmatpush1.msra.mxu0 0.0
  %910 = vmatprep.subr.mxu0 0.0
  %911 = vmatpush1.msra.mxu0 0.0
  %912 = vmatprep.subr.mxu0 0.0
  %913 = vmatpush1.msra.mxu0 0.0
  %914 = vmatprep.subr.mxu0 0.0
  %915 = vmatpush1.msra.mxu0 0.0
  %916 = vmatprep.subr.mxu0 0.0
  %917 = vmatpush1.msra.mxu0 0.0
  %918 = vmatprep.subr.mxu0 0.0
  %919 = vmatpush1.msra.mxu0 0.0
  %920 = vmatprep.subr.mxu0 0.0
  %921 = vmatpush1.msra.mxu0 0.0
  %922 = vmatprep.subr.mxu0 0.0
  %923 = vmatpush1.msra.mxu0 0.0
  %924 = vmatprep.subr.mxu0 0.0
  %925 = vmatpush1.msra.mxu0 0.0
  %926 = vmatprep.subr.mxu0 0.0
  %927 = vmatpush1.msra.mxu0 0.0
  %928 = vmatprep.subr.mxu0 0.0
  %929 = vmatpush1.msra.mxu0 0.0
  %930 = vmatprep.subr.mxu0 0.0
  %931 = vmatpush1.msra.mxu0 0.0
  %932 = vmatprep.subr.mxu0 0.0
  %933 = vmatpush1.msra.mxu0 0.0
  %934 = vmatprep.subr.mxu0 0.0
  %935 = vmatpush1.msra.mxu0 0.0
  %936 = vmatprep.mubr.f32.mxu0 0.0
  %937 = vmatmul.mubr.f32.gmra.mrb[0].mxu0 %v867
  %v938 = vpop.f32.mrb[0].mxu0
  %v939 = vadd.f32 0.0, %v938
  %v940 = vpop.f32.mrb[0].mxu0
  %v941 = vadd.f32 0.0, %v940
  %942 = vmatprep.mubr.f32.mxu0 0.0
  %943 = vmatmul.mubr.f32.gmra.mrb[0].mxu0 %v870
  %v944 = vpop.f32.mrb[0].mxu0
  %v945 = vadd.f32 0.0, %v944
  %v946 = vpop.f32.mrb[0].mxu0
  %v947 = vadd.f32 0.0, %v946
  %948 = vdwg.mxu0
  %v949 = vadd.f32 %v848, %v939
  %v950 = vadd.f32 %v849, %v941
  %v951 = vadd.f32 %v850, %v945
  %v952 = vadd.f32 %v851, %v947
  %vm953 = vcmp.ge.f32.partialorder %v949, 0.0
  %vm954 = vcmp.ge.f32.partialorder %v950, 0.0
  %vm955 = vcmp.ge.f32.partialorder %v951, 0.0
  %vm956 = vcmp.ge.f32.partialorder %v952, 0.0
  %v957 = vmul.f32 %v949, 0.01
  %v958 = vmul.f32 %v950, 0.01
  %v959 = vmul.f32 %v951, 0.01
  %v960 = vmul.f32 %v952, 0.01
  %v961 = vsel %vm953, %v949, %v957
  %v962 = vsel %vm954, %v950, %v958
  %v963 = vsel %vm955, %v951, %v959
  %v964 = vsel %vm956, %v952, %v960
  %965 = vst [vmem:[%s3] sm:$0xff] %v961
  %966 = vst [vmem:[%s3 + $0x8] sm:$0xff] %v962
  %967 = vst [vmem:[%s3 + $0x10] sm:$0xff] %v963
  %968 = vst [vmem:[%s3 + $0x18] sm:$0xff] %v964
  // Predicated region
  $region14: #{skip_connection_forward.1} parent=0 // pred_check
    _
  $region15: #{skip_connection_forward.1} parent=0 // pred_check_branch
    %970 = sbr.rel (0) target = $region17
  $region16: #{skip_connection_forward.1} parent=0 // pred_region
    _
  $region17: #{skip_connection_forward.1} parent=0 // pred_fallthru
    _
  // Predicated region
  $region18: #{skip_connection_forward.1} parent=0 // pred_check
    _
  $region19: #{skip_connection_forward.1} parent=0 // pred_check_branch
    %972 = sbr.rel (0) target = $region21
  $region20: #{skip_connection_forward.1} parent=0 // pred_region
    _
  $region21: #{skip_connection_forward.1} parent=0 // pred_fallthru
    _

</llo_original>
